<compile_context>
chip_gen: v7x
topology: tpu7x:2x2x1
jax: 0.10.0
libtpu: 0.0.40
codegen_flags: <defaults>
</compile_context>

<pallas_src>
import functools

import jax
import jax.numpy as jnp
import numpy as np
from jax import lax
from jax.experimental import pallas as pl
from jax.experimental.pallas import tpu as pltpu


def _round_up(x, m):
    return (x + m - 1) // m * m


def _sublanes(dtype):
    # Sub-32-bit dtypes pack along sublanes: native sublane tile is 8 * (4 / itemsize).
    return 8 * max(1, 4 // jnp.dtype(dtype).itemsize)


def _vmem_capacity_bytes():
    try:
        return int(pltpu.get_tpu_info().vmem_capacity_bytes)
    except Exception:
        return 64 * 1024 * 1024        # conservative fallback: v7x per-TensorCore VMEM


def _vmem_footprint(T, D, Cin, Cout, KKC, in_dtype, out_dtype):
    """Bytes of VMEM for one grid step: double-buffered pipeline tiles + compute temporaries."""
    in_b = jnp.dtype(in_dtype).itemsize
    out_b = jnp.dtype(out_dtype).itemsize
    s_in, s_out = _sublanes(in_dtype), _sublanes(out_dtype)
    Tin = _round_up(T + D, 128)
    fp = 0
    fp += 2 * _round_up(Cin, s_in) * Tin * in_b                    # x*m halo tiles (2 buffers)
    fp += 2 * 8 * Tin * 4                                          # mask halo tiles
    fp += 2 * _round_up(Cout, s_out) * T * out_b                   # conv-output tiles
    fp += 2 * 8 * T * 4                                            # updated-mask tiles
    fp += 2 * _round_up(Cout, s_in) * _round_up(KKC, 128) * in_b   # weights
    # single-buffered temporaries: in-VMEM im2col slab, f32 accumulator/epilogue, mask rows
    fp += _round_up(KKC, s_in) * T * in_b
    fp += 2 * _round_up(Cout, 8) * T * 4
    fp += 6 * 8 * T * 4
    return fp


def _choose_tile(n_out, D, Cin, Cout, KKC, in_dtype, out_dtype, budget, batch):
    """Largest 128-aligned lane tile whose VMEM footprint fits the budget (no artificial cap)."""
    t_max = _round_up(n_out, 128)
    lo, hi, best = 1, t_max // 128, 1
    while lo <= hi:
        mid = (lo + hi) // 2
        if _vmem_footprint(mid * 128, D, Cin, Cout, KKC, in_dtype, out_dtype) <= budget:
            best, lo = mid, mid + 1
        else:
            hi = mid - 1
    T = best * 128
    n_s = -(-n_out // T)
    # With a single-image batch, keep >= 2 spatial tiles so both v7x TensorCores get work.
    if batch == 1 and n_s == 1 and t_max >= 256:
        T = max(128, _round_up(-(-n_out // 2), 128))
        n_s = -(-n_out // T)
    return T, n_s


def _partial_conv_kernel(xs_ref, ms_ref, w_ref, out_ref, upd_ref, *, offsets, tile, sum_I):
    """One (batch, spatial-tile) grid step.

    xs_ref : (1, 1, Cin, Tin)  halo tile of x*clamp(mask,0,1) on the flattened padded grid
    ms_ref : (1, 1, 1,   Tin)  halo tile of the Cin-summed clamped mask (f32)
    w_ref  : (Cout, K*K*Cin)   conv weights, shift-major / channel-minor
    out_ref: (1, Cout, T)      normalized + clamped conv output (input dtype)
    upd_ref: (1, 1, T)         single-channel updated mask (identical across Cout)
    """
    T = tile
    x_tile = xs_ref[0, 0]                                                    # (Cin, Tin)

    # In-VMEM im2col: K*K statically shifted views of the halo tile stacked along the
    # contraction axis -> ONE MXU matmul, partial sums accumulate inside the MXU.
    slab = jnp.concatenate([x_tile[:, d:d + T] for d in offsets], axis=0)    # (K*K*Cin, T)
    acc = jnp.dot(w_ref[...], slab, preferred_element_type=jnp.float32)      # (Cout, T) f32

    # conv_1(mask) with all-ones weights == K*K window-sum of the Cin-summed mask
    # (8 VPU adds on a single sublane row; the mask is never K^2- or Cin-inflated).
    m_tile = ms_ref[0, 0]                                                    # (1, Tin) f32
    sum_mask = m_tile[:, offsets[0]:offsets[0] + T]
    for d in offsets[1:]:
        sum_mask = sum_mask + m_tile[:, d:d + T]
    sum_mask = jnp.maximum(sum_mask, 1e-8)                                   # (1, T)

    # ratio = clamp(sum_I / sum_mask, 0, sum_I); sum_mask > 0 so only the upper clamp binds.
    ratio = jnp.minimum(sum_I * pl.reciprocal(sum_mask, approx=True), sum_I)

    out_ref[0] = jnp.clip(acc * ratio, -1.0, 1.0).astype(out_ref.dtype)
    # NOTE: strict '>' after the max(., 1e-8) clamp — any true window-sum <= 1e-8 maps to 0,
    # exactly as in the reference (relevant only for fractional / non-binary masks).
    upd_ref[0] = jnp.where(sum_mask > 1e-8,
                           jnp.minimum(sum_mask * (1.0 / sum_I), 1.0),
                           0.0)


def partial_conv2d(x, mask, weight, kernel_size=3, *,
                   compute_dtype=jnp.bfloat16, out_dtype=None,
                   vmem_budget_bytes=None, broadcast_updated_mask=True):
    """x, mask: (B, Cin, H, W) NCHW; weight: (Cout, Cin, K, K). Returns (out, updated_mask)."""
    B, Cin, H, W = x.shape
    Cout = weight.shape[0]
    assert weight.shape[1] == Cin, "groups != 1 is not supported"
    K = kernel_size
    p = (K - 1) // 2
    assert H > p and W > p, "reflect padding requires H, W > (K-1)//2"
    Hp, Wp = H + 2 * p, W + 2 * p
    KK, KKC = K * K, K * K * Cin
    sum_I = float(KKC)                       # unpadded K*K*Cin
    N_out = H * Wp                           # output over all padded columns (extras sliced off)
    D = 2 * p * Wp + 2 * p                   # largest im2col shift on the flattened padded grid
    offsets = tuple(kh * Wp + kw for kh in range(K) for kw in range(K))

    out_dtype = x.dtype if out_dtype is None else jnp.dtype(out_dtype)
    in_bytes = jnp.dtype(compute_dtype).itemsize

    # Generation-aware VMEM budget/limit (v7x: 64 MiB per TC; v5e/v6e: 128 MiB).
    vmem_cap = _vmem_capacity_bytes()
    if vmem_budget_bytes is None:
        vmem_budget_bytes = min(vmem_cap * 3 // 8, 48 * 1024 * 1024)

    T, n_s = _choose_tile(N_out, D, Cin, Cout, KKC, compute_dtype, out_dtype,
                          vmem_budget_bytes, B)
    Tin = _round_up(T + D, 128)
    L = (n_s - 1) * T + Tin                  # flat length each halo tile may reach into
    fp = _vmem_footprint(T, D, Cin, Cout, KKC, compute_dtype, out_dtype)
    vmem_limit = int(min(vmem_cap * 3 // 4, fp + max(fp // 2, 8 * 1024 * 1024)))

    # clamp(mask) and x*mask ONCE at full resolution.
    m = jnp.clip(mask.astype(jnp.float32), 0.0, 1.0)
    xm = x.astype(jnp.float32) * m
    ms = jnp.sum(m, axis=1, keepdims=True)                                   # (B, 1, H, W)

    pad_spec = ((0, 0), (0, 0), (p, p), (p, p))
    xm_f = jnp.pad(xm, pad_spec, mode="reflect").reshape(B, Cin, Hp * Wp)
    ms_f = jnp.pad(ms, pad_spec, mode="reflect").reshape(B, 1, Hp * Wp)
    xm_f = jnp.pad(xm_f.astype(compute_dtype), ((0, 0), (0, 0), (0, L - Hp * Wp)))
    ms_f = jnp.pad(ms_f, ((0, 0), (0, 0), (0, L - Hp * Wp)))

    # Overlapping halo lane-tiles: ~D/T duplicated bytes instead of a 9x im2col slab.
    xm_t = jnp.stack([lax.slice_in_dim(xm_f, s * T, s * T + Tin, axis=2)
                      for s in range(n_s)], axis=1)                          # (B, n_s, Cin, Tin)
    ms_t = jnp.stack([lax.slice_in_dim(ms_f, s * T, s * T + Tin, axis=2)
                      for s in range(n_s)], axis=1)                          # (B, n_s, 1, Tin)

    # (Cout, Cin, K, K) -> (Cout, K, K, Cin) -> (Cout, K*K*Cin): shift-major, channel-minor,
    # matching the concatenation order of the in-VMEM slab.
    w2 = jnp.transpose(weight, (0, 2, 3, 1)).reshape(Cout, KKC).astype(compute_dtype)

    kernel = functools.partial(_partial_conv_kernel, offsets=offsets, tile=T, sum_I=sum_I)

    cost = pl.CostEstimate(
        flops=2 * B * n_s * Cout * KKC * T + 4 * B * n_s * (Cout + KK + 4) * T,
        transcendentals=B * n_s * T,
        bytes_accessed=(B * n_s * Cin * Tin * in_bytes                  # x*m halo tiles
                        + B * n_s * Tin * 4                             # mask halo tiles
                        + Cout * KKC * in_bytes                         # weights
                        + B * n_s * Cout * T * jnp.dtype(out_dtype).itemsize
                        + B * n_s * T * 4),                             # updated-mask writes
    )

    out_flat, upd_flat = pl.pallas_call(
        kernel,
        out_shape=(jax.ShapeDtypeStruct((B, Cout, n_s * T), out_dtype),
                   jax.ShapeDtypeStruct((B, 1, n_s * T), jnp.float32)),
        grid_spec=pltpu.PrefetchScalarGridSpec(
            num_scalar_prefetch=0,
            grid=(B, n_s),
            in_specs=[
                pl.BlockSpec((1, 1, Cin, Tin), lambda b, s: (b, s, 0, 0)),
                pl.BlockSpec((1, 1, 1, Tin), lambda b, s: (b, s, 0, 0)),
                pl.BlockSpec((Cout, KKC), lambda b, s: (0, 0)),
            ],
            out_specs=(
                pl.BlockSpec((1, Cout, T), lambda b, s: (b, 0, s)),
                pl.BlockSpec((1, 1, T), lambda b, s: (b, 0, s)),
            ),
        ),
        compiler_params=pltpu.CompilerParams(
            # Both axes independent -> both TensorCores get work (megacore / v7x 2-TC).
            dimension_semantics=("parallel", "parallel"),
            vmem_limit_bytes=vmem_limit,
        ),
        cost_estimate=cost,
    )(xm_t, ms_t, w2)

    out = out_flat[:, :, :N_out].reshape(B, Cout, H, Wp)[:, :, :, :W]
    upd = upd_flat[:, :, :N_out].reshape(B, 1, H, Wp)[:, :, :, :W]
    if broadcast_updated_mask:
        # PyTorch returns a Cout-channel updated mask with identical channels; broadcast here
        # for shape parity.  Pass broadcast_updated_mask=False to keep the 1-channel form and
        # avoid the extra HBM writeback if this call is a jit boundary.
        upd = jnp.broadcast_to(upd, (B, Cout, H, W))
    # Module default has bias=False; the bias=True branch adds a zeros Parameter (numerical no-op).
    return out, upd


def partial_conv2d_ref(x, mask, weight, kernel_size=3):
    """Pure-JAX f32 reference mirroring the PyTorch forward (sanity check)."""
    K = kernel_size
    Cin = x.shape[1]
    p = (K - 1) // 2
    m = jnp.clip(mask, 0.0, 1.0)

    def conv(inp, w):
        inp_p = jnp.pad(inp, ((0, 0), (0, 0), (p, p), (p, p)), mode="reflect")
        return lax.conv_general_dilated(
            inp_p, w, window_strides=(1, 1), padding="VALID",
            dimension_numbers=("NCHW", "OIHW", "NCHW"))

    out = conv(x * m, weight)
    sum_I = float(K * K * Cin)
    sum_mask = jnp.maximum(conv(m, jnp.ones_like(weight)), 1e-8)
    ratio = jnp.clip(sum_I / sum_mask, 0.0, sum_I)
    out = jnp.clip(out * ratio, -1.0, 1.0)
    updated = jnp.where(sum_mask > 1e-8,
                        jnp.clip(sum_mask / sum_I, 0.0, 1.0),
                        jnp.zeros_like(sum_mask))
    return out, updated


if __name__ == "__main__":
    key = jax.random.PRNGKey(0)
    kx, km, kw = jax.random.split(key, 3)
    B, Cin, Cout, H, W, K = 2, 4, 4, 16, 16, 3

    x = jax.random.normal(kx, (B, Cin, H, W), dtype=jnp.float32)
    # binary-ish mask with holes (values outside [0,1] would be clamped anyway)
    mask = (jax.random.uniform(km, (B, Cin, H, W)) > 0.4).astype(jnp.float32)
    # deterministic conv weight (PyTorch-style uniform fan-in init)
    fan_in = Cin * K * K
    bound = 1.0 / np.sqrt(fan_in)
    weight = jax.random.uniform(kw, (Cout, Cin, K, K),
                                minval=-bound, maxval=bound, dtype=jnp.float32)

    out, upd = partial_conv2d(x, mask, weight, kernel_size=K)
    out, upd = jax.block_until_ready((out, upd))

    out_r, upd_r = partial_conv2d_ref(x, mask, weight, kernel_size=K)
    assert out.shape == (B, Cout, H, W) and upd.shape == (B, Cout, H, W)
    # out goes through a bf16 MXU input path (f32 accumulate) + EUP approx reciprocal for the
    # ratio; tolerance reflects that (values live in [-1, 1]).  Pass compute_dtype=jnp.float32
    # for bit-closer PyTorch parity.
    assert np.allclose(np.asarray(out), np.asarray(out_r), atol=5e-2, rtol=5e-2)
    # Updated mask is computed entirely in f32 -> tight check.
    assert np.allclose(np.asarray(upd), np.asarray(upd_r), atol=1e-5, rtol=1e-5)

    print("KERNEL_OK")
</pallas_src>

<mosaic_0001>
module attributes {stable_mosaic.version = 11 : i64} {
  func.func @_partial_conv_kernel(%arg0: i32, %arg1: i32, %arg2: memref<1x1x4x512xbf16, #tpu.memory_space<vmem>>, %arg3: memref<1x1x1x512xf32, #tpu.memory_space<vmem>>, %arg4: memref<4x36xbf16, #tpu.memory_space<vmem>>, %arg5: memref<1x4x384xf32, #tpu.memory_space<vmem>>, %arg6: memref<1x1x384xf32, #tpu.memory_space<vmem>>) attributes {dimension_semantics = [#tpu.dimension_semantics<parallel>, #tpu.dimension_semantics<parallel>], iteration_bounds = array<i64: 2, 1>, scalar_prefetch = 0 : i64, scratch_operands = 0 : i64, tpu.core_type = #tpu.core_type<tc>, window_params = [{transform_indices = @transform_0, window_bounds = array<i64: 1, 1, 4, 512>}, {transform_indices = @transform_1, window_bounds = array<i64: 1, 1, 1, 512>}, {pipeline_mode = #tpu.pipeline_mode<synchronous>, transform_indices = @transform_2, window_bounds = array<i64: 4, 36>}, {transform_indices = @transform_3, window_bounds = array<i64: 1, 4, 384>}, {transform_indices = @transform_4, window_bounds = array<i64: 1, 1, 384>}]} {
    %c0 = arith.constant 0 : index
    %c0_0 = arith.constant 0 : index
    %c0_1 = arith.constant 0 : index
    %c0_2 = arith.constant 0 : index
    %0 = vector.load %arg2[%c0, %c0_0, %c0_1, %c0_2] : memref<1x1x4x512xbf16, #tpu.memory_space<vmem>>, vector<1x1x4x512xbf16>
    %1 = vector.shape_cast %0 : vector<1x1x4x512xbf16> to vector<4x512xbf16>
    %2 = vector.extract_strided_slice %1 {offsets = [0, 0], sizes = [4, 384], strides = [1, 1]} : vector<4x512xbf16> to vector<4x384xbf16>
    %3 = vector.extract_strided_slice %1 {offsets = [0, 1], sizes = [4, 384], strides = [1, 1]} : vector<4x512xbf16> to vector<4x384xbf16>
    %4 = vector.extract_strided_slice %1 {offsets = [0, 2], sizes = [4, 384], strides = [1, 1]} : vector<4x512xbf16> to vector<4x384xbf16>
    %5 = vector.extract_strided_slice %1 {offsets = [0, 18], sizes = [4, 384], strides = [1, 1]} : vector<4x512xbf16> to vector<4x384xbf16>
    %6 = vector.extract_strided_slice %1 {offsets = [0, 19], sizes = [4, 384], strides = [1, 1]} : vector<4x512xbf16> to vector<4x384xbf16>
    %7 = vector.extract_strided_slice %1 {offsets = [0, 20], sizes = [4, 384], strides = [1, 1]} : vector<4x512xbf16> to vector<4x384xbf16>
    %8 = vector.extract_strided_slice %1 {offsets = [0, 36], sizes = [4, 384], strides = [1, 1]} : vector<4x512xbf16> to vector<4x384xbf16>
    %9 = vector.extract_strided_slice %1 {offsets = [0, 37], sizes = [4, 384], strides = [1, 1]} : vector<4x512xbf16> to vector<4x384xbf16>
    %10 = vector.extract_strided_slice %1 {offsets = [0, 38], sizes = [4, 384], strides = [1, 1]} : vector<4x512xbf16> to vector<4x384xbf16>
    %11 = tpu.concatenate %2, %3, %4, %5, %6, %7, %8, %9, %10 in 0 : vector<4x384xbf16>, vector<4x384xbf16>, vector<4x384xbf16>, vector<4x384xbf16>, vector<4x384xbf16>, vector<4x384xbf16>, vector<4x384xbf16>, vector<4x384xbf16>, vector<4x384xbf16> -> vector<36x384xbf16>
    %c0_3 = arith.constant 0 : index
    %c0_4 = arith.constant 0 : index
    %12 = vector.load %arg4[%c0_3, %c0_4] : memref<4x36xbf16, #tpu.memory_space<vmem>>, vector<4x36xbf16>
    %cst = arith.constant dense<0.000000e+00> : vector<4x384xf32>
    %13 = tpu.matmul %12, %11, %cst {dimension_numbers = #tpu.dot_dimension_numbers<[1], [0], [0], [1], [0, 0, 1, 1], [], []>} : vector<4x36xbf16>, vector<36x384xbf16>, vector<4x384xf32> -> vector<4x384xf32>
    %c0_5 = arith.constant 0 : index
    %c0_6 = arith.constant 0 : index
    %c0_7 = arith.constant 0 : index
    %c0_8 = arith.constant 0 : index
    %14 = vector.load %arg3[%c0_5, %c0_6, %c0_7, %c0_8] : memref<1x1x1x512xf32, #tpu.memory_space<vmem>>, vector<1x1x1x512xf32>
    %15 = vector.shape_cast %14 : vector<1x1x1x512xf32> to vector<1x512xf32>
    %16 = vector.extract_strided_slice %15 {offsets = [0, 0], sizes = [1, 384], strides = [1, 1]} : vector<1x512xf32> to vector<1x384xf32>
    %17 = vector.extract_strided_slice %15 {offsets = [0, 1], sizes = [1, 384], strides = [1, 1]} : vector<1x512xf32> to vector<1x384xf32>
    %18 = arith.addf %16, %17 : vector<1x384xf32>
    %19 = vector.extract_strided_slice %15 {offsets = [0, 2], sizes = [1, 384], strides = [1, 1]} : vector<1x512xf32> to vector<1x384xf32>
    %20 = arith.addf %18, %19 : vector<1x384xf32>
    %21 = vector.extract_strided_slice %15 {offsets = [0, 18], sizes = [1, 384], strides = [1, 1]} : vector<1x512xf32> to vector<1x384xf32>
    %22 = arith.addf %20, %21 : vector<1x384xf32>
    %23 = vector.extract_strided_slice %15 {offsets = [0, 19], sizes = [1, 384], strides = [1, 1]} : vector<1x512xf32> to vector<1x384xf32>
    %24 = arith.addf %22, %23 : vector<1x384xf32>
    %25 = vector.extract_strided_slice %15 {offsets = [0, 20], sizes = [1, 384], strides = [1, 1]} : vector<1x512xf32> to vector<1x384xf32>
    %26 = arith.addf %24, %25 : vector<1x384xf32>
    %27 = vector.extract_strided_slice %15 {offsets = [0, 36], sizes = [1, 384], strides = [1, 1]} : vector<1x512xf32> to vector<1x384xf32>
    %28 = arith.addf %26, %27 : vector<1x384xf32>
    %29 = vector.extract_strided_slice %15 {offsets = [0, 37], sizes = [1, 384], strides = [1, 1]} : vector<1x512xf32> to vector<1x384xf32>
    %30 = arith.addf %28, %29 : vector<1x384xf32>
    %31 = vector.extract_strided_slice %15 {offsets = [0, 38], sizes = [1, 384], strides = [1, 1]} : vector<1x512xf32> to vector<1x384xf32>
    %32 = arith.addf %30, %31 : vector<1x384xf32>
    %cst_9 = arith.constant 9.99999993E-9 : f32
    %33 = vector.broadcast %cst_9 : f32 to vector<1x384xf32>
    %34 = arith.maximumf %32, %33 : vector<1x384xf32>
    %35 = tpu.reciprocal %34 {approx = true} : vector<1x384xf32> -> vector<1x384xf32>
    %cst_10 = arith.constant 3.600000e+01 : f32
    %36 = vector.broadcast %cst_10 : f32 to vector<1x384xf32>
    %37 = arith.mulf %36, %35 : vector<1x384xf32>
    %cst_11 = arith.constant 3.600000e+01 : f32
    %38 = vector.broadcast %cst_11 : f32 to vector<1x384xf32>
    %39 = arith.minimumf %37, %38 : vector<1x384xf32>
    %40 = vector.broadcast %39 : vector<1x384xf32> to vector<4x384xf32>
    %41 = arith.mulf %13, %40 : vector<4x384xf32>
    %cst_12 = arith.constant -1.000000e+00 : f32
    %cst_13 = arith.constant 1.000000e+00 : f32
    %42 = vector.broadcast %cst_12 : f32 to vector<4x384xf32>
    %43 = arith.maximumf %42, %41 : vector<4x384xf32>
    %44 = vector.broadcast %cst_13 : f32 to vector<4x384xf32>
    %45 = arith.minimumf %44, %43 : vector<4x384xf32>
    %c0_14 = arith.constant 0 : index
    %c0_15 = arith.constant 0 : index
    %c0_16 = arith.constant 0 : index
    %46 = vector.load %arg5[%c0_14, %c0_15, %c0_16] : memref<1x4x384xf32, #tpu.memory_space<vmem>>, vector<1x4x384xf32>
    %47 = vector.shape_cast %46 : vector<1x4x384xf32> to vector<4x384xf32>
    %48 = vector.shape_cast %45 : vector<4x384xf32> to vector<1x4x384xf32>
    tpu.vector_store %arg5[%c0_14, %c0_15, %c0_16], %48 {strides = array<i32>} : memref<1x4x384xf32, #tpu.memory_space<vmem>>, vector<1x4x384xf32>,
    %cst_17 = arith.constant 9.99999993E-9 : f32
    %49 = vector.broadcast %cst_17 : f32 to vector<1x384xf32>
    %50 = arith.cmpf ogt, %34, %49 : vector<1x384xf32>
    %cst_18 = arith.constant 0.027777778 : f32
    %51 = vector.broadcast %cst_18 : f32 to vector<1x384xf32>
    %52 = arith.mulf %34, %51 : vector<1x384xf32>
    %cst_19 = arith.constant 1.000000e+00 : f32
    %53 = vector.broadcast %cst_19 : f32 to vector<1x384xf32>
    %54 = arith.minimumf %52, %53 : vector<1x384xf32>
    %cst_20 = arith.constant 0.000000e+00 : f32
    %55 = vector.broadcast %cst_20 : f32 to vector<1x384xf32>
    %56 = arith.select %50, %54, %55 : vector<1x384xi1>, vector<1x384xf32>
    %c0_21 = arith.constant 0 : index
    %c0_22 = arith.constant 0 : index
    %c0_23 = arith.constant 0 : index
    %57 = vector.load %arg6[%c0_21, %c0_22, %c0_23] : memref<1x1x384xf32, #tpu.memory_space<vmem>>, vector<1x1x384xf32>
    %58 = vector.shape_cast %57 : vector<1x1x384xf32> to vector<1x384xf32>
    %59 = vector.shape_cast %56 : vector<1x384xf32> to vector<1x1x384xf32>
    tpu.vector_store %arg6[%c0_21, %c0_22, %c0_23], %59 {strides = array<i32>} : memref<1x1x384xf32, #tpu.memory_space<vmem>>, vector<1x1x384xf32>,
    return
  }
  func.func @transform_0(%arg0: i32, %arg1: i32) -> (i32, i32, i32, i32) {
    %c0_i32 = arith.constant 0 : i32
    %c0_i32_0 = arith.constant 0 : i32
    %c0_i32_1 = arith.constant 0 : i32
    return %arg0, %arg1, %c0_i32, %c0_i32_0 : i32, i32, i32, i32
  }
  func.func @transform_1(%arg0: i32, %arg1: i32) -> (i32, i32, i32, i32) {
    %c0_i32 = arith.constant 0 : i32
    %c0_i32_0 = arith.constant 0 : i32
    %c0_i32_1 = arith.constant 0 : i32
    return %arg0, %arg1, %c0_i32, %c0_i32_0 : i32, i32, i32, i32
  }
  func.func @transform_2(%arg0: i32, %arg1: i32) -> (i32, i32) {
    %c0_i32 = arith.constant 0 : i32
    %c0_i32_0 = arith.constant 0 : i32
    %c0_i32_1 = arith.constant 0 : i32
    return %c0_i32, %c0_i32_0 : i32, i32
  }
  func.func @transform_3(%arg0: i32, %arg1: i32) -> (i32, i32, i32) {
    %c0_i32 = arith.constant 0 : i32
    %c0_i32_0 = arith.constant 0 : i32
    return %arg0, %c0_i32, %arg1 : i32, i32, i32
  }
  func.func @transform_4(%arg0: i32, %arg1: i32) -> (i32, i32, i32) {
    %c0_i32 = arith.constant 0 : i32
    %c0_i32_0 = arith.constant 0 : i32
    return %arg0, %c0_i32, %arg1 : i32, i32, i32
  }
}

</mosaic_0001>

<llo_original>
// kernel: tpu_custom_call.1
$region0: #{tpu_custom_call.1}
  #allocation0 [shape = 'u32[]', space=smem, size = 0x4, offset = 0x4, fixed_abs, tag = 'smem constant byte address 0x4 - core index']
  #allocation1 [shape = 'u32[144,128]{1,0:T(1,128)}', space=vmem, size = 0x12000, scoped, tag = 'internal scratch']
  %s0 = inlined_call_operand.hbm [shape: bf16[2,1,4,512], index: 0, kind: input, shape index: {}]
  %s1 = inlined_call_operand.hbm [shape: f32[2,1,1,512], index: 1, kind: input, shape index: {}]
  %s2 = inlined_call_operand.vmem [shape: bf16[4,36], index: 2, kind: input, shape index: {}]
  %s3 = inlined_call_operand.hbm [shape: f32[2,4,384], index: 3, kind: output, shape index: {0}]
  %s4 = inlined_call_operand.hbm [shape: f32[2,1,384], index: 4, kind: output, shape index: {1}]
  %5 = xla_tuple %s3, %s4
  %s6 = sld [smem:[#allocation0]]
  $region61: #{tpu_custom_call.1} parent=0
    _
  %s8 = ssub.s32 1, %s6
  %s9 = scalar_select 0, %s8, %s6
  $region1: #{tpu_custom_call.1} parent=0
    #allocation2 [shape = 'u8[8192]{0}', space=vmem, size = 0x2000, scoped, tag = 'input window, operand 0']
    #allocation3 [shape = 's32[2]{0}', space=sflag, size = 0x8, scoped, tag = 'scoped memory for tpu_custom_call.1']
    #allocation4 [shape = 's32[2]{0}', space=sflag, size = 0x8, scoped, tag = 'scoped memory for tpu_custom_call.1']
    #allocation5 [shape = 'u8[4096]{0}', space=vmem, size = 0x1000, scoped, tag = 'input window, operand 1']
    #allocation6 [shape = 's32[2]{0}', space=sflag, size = 0x8, scoped, tag = 'scoped memory for tpu_custom_call.1']
    #allocation7 [shape = 'u8[12288]{0}', space=vmem, size = 0x3000, scoped, tag = 'output window, operand 0']
    #allocation8 [shape = 'u8[3072]{0}', space=vmem, size = 0xc00, scoped, tag = 'output window, operand 1']
    #allocation9 [shape = 's32[2]{0}', space=sflag, size = 0x8, scoped, tag = 'scoped memory for tpu_custom_call.1']
    %10 = vsyncpa [#allocation3], 0
    %s11 = scalar_lea.sflag [#allocation3], 1
    %12 = vsyncpa %s11, 0
    %13 = vsyncpa [#allocation6], 0
    %s14 = scalar_lea.sflag [#allocation6], 1
    %15 = vsyncpa %s14, 0
    %16 = vsyncpa [#allocation4], 0
    %s17 = scalar_lea.sflag [#allocation4], 1
    %18 = vsyncpa %s17, 0
    %19 = vsyncpa [#allocation9], 0
    %s20 = scalar_lea.sflag [#allocation9], 1
    %21 = vsyncpa %s20, 0
    loop: start=0, step=1, limit=4
    $region2: #{tpu_custom_call.1} parent=1 // loop_pre_header
      _
    $region3: #{tpu_custom_call.1} parent=1 // loop_header
      %s23 = sphi 0, %s27
      %p24 = scmp.ge.s32.totalorder %s23, 4
      %s30 = sphi 0, %s42
      %s31 = sphi 0, %s38
      %s32 = sphi 0, %s30
      %s33 = sphi 0, %s31
      %s34 = sphi 0, %s32
      %s35 = sphi 0, %s33
      %s47 = sphi 0, %s49
      %s50 = sphi 0, %s47
      %s51 = sphi 0, %s50
      %s67 = sphi 0, %s51
      %s75 = sphi 0, %s77
      %s78 = sphi 0, %s75
      %s79 = sphi 0, %s78
      %s95 = sphi 0, %s79
      %s99 = sphi 0, %s99
      %s101 = sphi 0, %s99
      %s102 = sphi 0, %s101
      %s116 = sphi 0, %s102
      %s124 = sphi 0, %s126
      %s127 = sphi 0, %s124
      %s128 = sphi 0, %s127
      %s144 = sphi 0, %s128
      %s152 = sphi 0, %s154
      %s155 = sphi 0, %s152
      %s156 = sphi 0, %s155
      %s172 = sphi 0, %s156
    $region4: #{tpu_custom_call.1} parent=1 // loop_header_branch
      %26 = sbr.rel (%p24) target = $region8
    $region5: #{tpu_custom_call.1} parent=1 // loop_body
      %s28 = ssub.s32 %s23, 1
      %s29 = ssub.s32 %s23, 2
      %s36 = sadd.s32 1, %s31
      %p37 = scmp.ge.s32.totalorder %s36, 1
      %s38 = scalar_select %p37, 0, %s36
      %s39 = sadd.s32 1, %s30
      %s40 = scalar_select %p37, %s39, %s30
      %p41 = scmp.ge.s32.totalorder %s40, 2
      %s42 = scalar_select %p41, 0, %s40
      %s43 = ssub.s32 %s30, %s42
      %s44 = ssub.s32 %s31, %s38
      %s45 = sor.u32 %s43, %s44
      %p46 = scmp.eq.s32.totalorder %s45, 0
      %s48 = sadd.s32 %s47, 1
      %s49 = scalar_select %p46, %s47, %s48
      %p52 = pneg %p46
      %p53 = scmp.eq.s32.totalorder %s23, 1
      %p54 = por %p52, %p53
      %p55 = scmp.ne.s32.totalorder %s47, %s50
      %p56 = scmp.eq.s32.totalorder %s23, 0
      %p57 = por %p55, %p56
      %p58 = scmp.ne.s32.totalorder %s47, %s50
      %p59 = scmp.eq.s32.totalorder %s28, 1
      %p60 = por %p58, %p59
      %p61 = scmp.ne.s32.totalorder %s50, %s51
      %p62 = scmp.eq.s32.totalorder %s28, 0
      %p63 = por %p61, %p62
      %p64 = scmp.ne.s32.totalorder %s50, %s51
      %p65 = scmp.eq.s32.totalorder %s29, 1
      %p66 = por %p64, %p65
      %p68 = scmp.ne.s32.totalorder %s51, %s67
      %p69 = scmp.eq.s32.totalorder %s29, 0
      %p70 = por %p68, %p69
      %s71 = ssub.s32 %s30, %s42
      %s72 = ssub.s32 %s31, %s38
      %s73 = sor.u32 %s71, %s72
      %p74 = scmp.eq.s32.totalorder %s73, 0
      %s76 = sadd.s32 %s75, 1
      %s77 = scalar_select %p74, %s75, %s76
      %p80 = pneg %p74
      %p81 = scmp.eq.s32.totalorder %s23, 1
      %p82 = por %p80, %p81
      %p83 = scmp.ne.s32.totalorder %s75, %s78
      %p84 = scmp.eq.s32.totalorder %s23, 0
      %p85 = por %p83, %p84
      %p86 = scmp.ne.s32.totalorder %s75, %s78
      %p87 = scmp.eq.s32.totalorder %s28, 1
      %p88 = por %p86, %p87
      %p89 = scmp.ne.s32.totalorder %s78, %s79
      %p90 = scmp.eq.s32.totalorder %s28, 0
      %p91 = por %p89, %p90
      %p92 = scmp.ne.s32.totalorder %s78, %s79
      %p93 = scmp.eq.s32.totalorder %s29, 1
      %p94 = por %p92, %p93
      %p96 = scmp.ne.s32.totalorder %s79, %s95
      %p97 = scmp.eq.s32.totalorder %s29, 0
      %p98 = por %p96, %p97
      %s100 = sadd.s32 %s99, 1
      %p103 = scmp.eq.s32.totalorder %s23, 1
      %p104 = scmp.ne.s32.totalorder %s99, %s101
      %p105 = scmp.eq.s32.totalorder %s23, 0
      %p106 = por %p104, %p105
      %p107 = scmp.ne.s32.totalorder %s99, %s101
      %p108 = scmp.eq.s32.totalorder %s28, 1
      %p109 = por %p107, %p108
      %p110 = scmp.ne.s32.totalorder %s101, %s102
      %p111 = scmp.eq.s32.totalorder %s28, 0
      %p112 = por %p110, %p111
      %p113 = scmp.ne.s32.totalorder %s101, %s102
      %p114 = scmp.eq.s32.totalorder %s29, 1
      %p115 = por %p113, %p114
      %p117 = scmp.ne.s32.totalorder %s102, %s116
      %p118 = scmp.eq.s32.totalorder %s29, 0
      %p119 = por %p117, %p118
      %s120 = ssub.s32 %s30, %s42
      %s121 = ssub.s32 %s31, %s38
      %s122 = sor.u32 %s120, %s121
      %p123 = scmp.eq.s32.totalorder %s122, 0
      %s125 = sadd.s32 %s124, 1
      %s126 = scalar_select %p123, %s124, %s125
      %p129 = pneg %p123
      %p130 = scmp.eq.s32.totalorder %s23, 1
      %p131 = por %p129, %p130
      %p132 = scmp.ne.s32.totalorder %s124, %s127
      %p133 = scmp.eq.s32.totalorder %s23, 0
      %p134 = por %p132, %p133
      %p135 = scmp.ne.s32.totalorder %s124, %s127
      %p136 = scmp.eq.s32.totalorder %s28, 1
      %p137 = por %p135, %p136
      %p138 = scmp.ne.s32.totalorder %s127, %s128
      %p139 = scmp.eq.s32.totalorder %s28, 0
      %p140 = por %p138, %p139
      %p141 = scmp.ne.s32.totalorder %s127, %s128
      %p142 = scmp.eq.s32.totalorder %s29, 1
      %p143 = por %p141, %p142
      %p145 = scmp.ne.s32.totalorder %s128, %s144
      %p146 = scmp.eq.s32.totalorder %s29, 0
      %p147 = por %p145, %p146
      %s148 = ssub.s32 %s30, %s42
      %s149 = ssub.s32 %s31, %s38
      %s150 = sor.u32 %s148, %s149
      %p151 = scmp.eq.s32.totalorder %s150, 0
      %s153 = sadd.s32 %s152, 1
      %s154 = scalar_select %p151, %s152, %s153
      %p157 = pneg %p151
      %p158 = scmp.eq.s32.totalorder %s23, 1
      %p159 = por %p157, %p158
      %p160 = scmp.ne.s32.totalorder %s152, %s155
      %p161 = scmp.eq.s32.totalorder %s23, 0
      %p162 = por %p160, %p161
      %p163 = scmp.ne.s32.totalorder %s152, %s155
      %p164 = scmp.eq.s32.totalorder %s28, 1
      %p165 = por %p163, %p164
      %p166 = scmp.ne.s32.totalorder %s155, %s156
      %p167 = scmp.eq.s32.totalorder %s28, 0
      %p168 = por %p166, %p167
      %p169 = scmp.ne.s32.totalorder %s155, %s156
      %p170 = scmp.eq.s32.totalorder %s29, 1
      %p171 = por %p169, %p170
      %p173 = scmp.ne.s32.totalorder %s156, %s172
      %p174 = scmp.eq.s32.totalorder %s29, 0
      %p175 = por %p173, %p174
      %p176 = scmp.le.s32.totalorder 1, %s23
      %p177 = scmp.lt.s32.totalorder %s23, 3
      %p178 = pnand %p176, %p177
      %p179 = pneg %p178
      // Predicated region
      $region9: #{tpu_custom_call.1} parent=5 // pred_check
        _
      $region10: #{tpu_custom_call.1} parent=5 // pred_check_branch
        %181 = sbr.rel (%p178) target = $region12
      $region11: #{tpu_custom_call.1} parent=5 // pred_region
        %s182 = ssub.s32 %s23, 1
        // Predicated region
        $region13: #{tpu_custom_call.1} parent=11 // pred_check
          %p183 = pneg %p112
        $region14: #{tpu_custom_call.1} parent=11 // pred_check_branch
          %185 = sbr.rel (%p183) target = $region16
        $region15: #{tpu_custom_call.1} parent=11 // pred_region
          _
        $region16: #{tpu_custom_call.1} parent=11 // pred_fallthru
          _
      $region12: #{tpu_custom_call.1} parent=5 // pred_fallthru
        _
      %p186 = scmp.lt.s32.totalorder %s23, 2
      // Predicated region
      $region17: #{tpu_custom_call.1} parent=5 // pred_check
        %p187 = pneg %p186
      $region18: #{tpu_custom_call.1} parent=5 // pred_check_branch
        %189 = sbr.rel (%p187) target = $region20
      $region19: #{tpu_custom_call.1} parent=5 // pred_region
        // Predicated region
        $region21: #{tpu_custom_call.1} parent=19 // pred_check
          %p190 = pneg %p57
        $region22: #{tpu_custom_call.1} parent=19 // pred_check_branch
          %192 = sbr.rel (%p190) target = $region24
        $region23: #{tpu_custom_call.1} parent=19 // pred_region
          %s193 = sand.u32 %s47, 1
          %s194 = scalar_lea.sflag [#allocation3], %s193
          %s195 = sand.u32 %s47, 1
          %s196 = smul.addr %s195, 8
          %s197 = scalar_lea.vmem [#allocation2], %s196
          %s199 = ssub.s32 128, 128
          %200 = vsyncadd %s194, %s199
          %s201 = smul.addr %s31, 4
          %s202 = smul.addr %s30, 4
          %s203 = sadd.s32 %s201, %s202
          %s204 = smul.addr %s203, 32
          %s205 = scalar_lea.hbm %s0, %s204
          %s207 = sshll.u32 %s197, 4
          %s208 = int_to_ptr.vmem [resolvable:$true] %s207
          %210 = dma.hbm_to_vmem [thread:$0]  %s205, 128, %s208, %s194
        $region24: #{tpu_custom_call.1} parent=19 // pred_fallthru
          _
        // Predicated region
        $region25: #{tpu_custom_call.1} parent=19 // pred_check
          %p211 = pneg %p85
        $region26: #{tpu_custom_call.1} parent=19 // pred_check_branch
          %213 = sbr.rel (%p211) target = $region28
        $region27: #{tpu_custom_call.1} parent=19 // pred_region
          %s214 = sand.u32 %s75, 1
          %s215 = scalar_lea.sflag [#allocation6], %s214
          %s216 = sand.u32 %s75, 1
          %s217 = smul.addr %s216, 4
          %s218 = scalar_lea.vmem [#allocation5], %s217
          %s220 = ssub.s32 64, 64
          %221 = vsyncadd %s215, %s220
          %s222 = smul.addr %s31, 4
          %s223 = smul.addr %s30, 4
          %s224 = sadd.s32 %s222, %s223
          %s225 = smul.addr %s224, 16
          %s226 = scalar_lea.hbm %s1, %s225
          %s228 = sshll.u32 %s218, 4
          %s229 = int_to_ptr.vmem [resolvable:$true] %s228
          %231 = dma.hbm_to_vmem [thread:$0]  %s226, 64, %s229, %s215
        $region28: #{tpu_custom_call.1} parent=19 // pred_fallthru
          _
      $region20: #{tpu_custom_call.1} parent=5 // pred_fallthru
        _
      %p232 = scmp.le.s32.totalorder 1, %s23
      %p233 = scmp.lt.s32.totalorder %s23, 3
      %p234 = pnand %p232, %p233
      %p235 = pneg %p234
      // Predicated region
      $region29: #{tpu_custom_call.1} parent=5 // pred_check
        _
      $region30: #{tpu_custom_call.1} parent=5 // pred_check_branch
        %237 = sbr.rel (%p234) target = $region32
      $region31: #{tpu_custom_call.1} parent=5 // pred_region
        %s238 = ssub.s32 %s23, 1
        %s239 = sand.u32 %s50, 1
        %s240 = scalar_lea.sflag [#allocation3], %s239
        %s241 = sand.u32 %s50, 1
        %s242 = smul.addr %s241, 8
        %s243 = scalar_lea.vmem [#allocation2], %s242
        // Predicated region
        $region33: #{tpu_custom_call.1} parent=31 // pred_check
          %p244 = pneg %p63
        $region34: #{tpu_custom_call.1} parent=31 // pred_check_branch
          %246 = sbr.rel (%p244) target = $region36
        $region35: #{tpu_custom_call.1} parent=31 // pred_region
          %247 = dma.done %s240, 128
        $region36: #{tpu_custom_call.1} parent=31 // pred_fallthru
          _
        %s248 = sand.u32 %s78, 1
        %s249 = scalar_lea.sflag [#allocation6], %s248
        %s250 = sand.u32 %s78, 1
        %s251 = smul.addr %s250, 4
        %s252 = scalar_lea.vmem [#allocation5], %s251
        // Predicated region
        $region37: #{tpu_custom_call.1} parent=31 // pred_check
          %p253 = pneg %p91
        $region38: #{tpu_custom_call.1} parent=31 // pred_check_branch
          %255 = sbr.rel (%p253) target = $region40
        $region39: #{tpu_custom_call.1} parent=31 // pred_region
          %256 = dma.done %s249, 64
        $region40: #{tpu_custom_call.1} parent=31 // pred_fallthru
          _
        %s257 = sand.u32 %s50, 1
        %s258 = scalar_lea.sflag [#allocation3], %s257
        %s259 = sand.u32 %s50, 1
        %s260 = smul.addr %s259, 8
        %s261 = scalar_lea.vmem [#allocation2], %s260
        %p262 = pneg %p63
        %p263 = pneg %p60
        %s264 = sand.u32 %s78, 1
        %s265 = scalar_lea.sflag [#allocation6], %s264
        %s266 = sand.u32 %s78, 1
        %s267 = smul.addr %s266, 4
        %s268 = scalar_lea.vmem [#allocation5], %s267
        %p269 = pneg %p91
        %p270 = pneg %p88
        %p271 = pneg %p112
        %p272 = pneg %p109
        %p273 = pneg %p140
        %p274 = pneg %p137
        %s275 = sand.u32 %s127, 1
        %s276 = scalar_lea.sflag [#allocation4], %s275
        %s277 = sand.u32 %s127, 1
        %s278 = smul.addr %s277, 12
        %s279 = scalar_lea.vmem [#allocation7], %s278
        %p280 = pneg %p168
        %p281 = pneg %p165
        %s282 = sand.u32 %s155, 1
        %s283 = scalar_lea.sflag [#allocation9], %s282
        %s284 = sand.u32 %s155, 1
        %s285 = smul.addr %s284, 3
        %s286 = scalar_lea.vmem [#allocation8], %s285
        %s287 = smul.u32 3, %s33
        %s288 = smul.u32 3, %s33
        %v290 = vld [vmem:[%s243] sm:$0xff]
        %v292 = vcombine.high %v290, %v290
        %v294 = vunpack.c.l.s4 1983009808
        %v295 = vunpack.c.0.s8 %v294
        %v296 = vlaneseq
        %v297 = vshrl.u32 %v296, 7
        %v298 = vsub.s32 %v295, %v297
        %v299 = vrot.slane %v290, %v298
        %v301 = vunpack.c.l.s4 1983009808
        %v302 = vunpack.c.0.s8 %v301
        %v303 = vlaneseq
        %v304 = vshrl.u32 %v303, 7
        %v305 = vsub.s32 %v302, %v304
        %v306 = vrot.slane %v292, %v305
        %v307 = vcombine.high %v299, %v299
        %v308 = vcombine.low %v290, %v290
        %v310 = vunpack.c.l.s4 1983009808
        %v311 = vunpack.c.0.s8 %v310
        %v312 = vlaneseq
        %v313 = vshrl.u32 %v312, 7
        %v314 = vsub.s32 %v311, %v313
        %v315 = vrot.slane %v308, %v314
        %v316 = vcombine.high %v315, %v315
        %317 = vrot.lane.b32.xlu0 %v315, 127
        %v318 = vpop.permute.xlu0 %317
        %319 = vrot.lane.b32.xlu0 %v316, 127
        %v320 = vpop.permute.xlu0 %319
        %321 = vrot.lane.b32.xlu0 %v299, 127
        %v322 = vpop.permute.xlu0 %321
        %323 = vrot.lane.b32.xlu0 %v307, 127
        %v324 = vpop.permute.xlu0 %323
        %vm325 = vcmask 1039360
        %v326 = vsel %vm325, %v318, %v320
        %v327 = vsel %vm325, %v320, %v322
        %v328 = vsel %vm325, %v322, %v324
        %v329 = vcombine.low %v299, %v299
        %v330 = vcombine.low %v306, %v306
        %331 = vrot.lane.b32.xlu0 %v329, 126
        %v332 = vpop.permute.xlu0 %331
        %333 = vrot.lane.b32.xlu0 %v299, 126
        %v334 = vpop.permute.xlu0 %333
        %335 = vrot.lane.b32.xlu0 %v330, 126
        %v336 = vpop.permute.xlu0 %335
        %337 = vrot.lane.b32.xlu0 %v306, 126
        %v338 = vpop.permute.xlu0 %337
        %vm339 = vcmask 1031168
        %v340 = vsel %vm339, %v332, %v334
        %v341 = vsel %vm339, %v334, %v336
        %v342 = vsel %vm339, %v336, %v338
        %v343 = vcombine.low %v315, %v315
        %344 = vrot.lane.b32.xlu0 %v343, 110
        %v345 = vpop.permute.xlu0 %344
        %346 = vrot.lane.b32.xlu0 %v315, 110
        %v347 = vpop.permute.xlu0 %346
        %348 = vrot.lane.b32.xlu0 %v329, 110
        %v349 = vpop.permute.xlu0 %348
        %350 = vrot.lane.b32.xlu0 %v299, 110
        %v351 = vpop.permute.xlu0 %350
        %vm352 = vcmask 900096
        %v353 = vsel %vm352, %v345, %v347
        %v354 = vsel %vm352, %v347, %v349
        %v355 = vsel %vm352, %v349, %v351
        %v356 = vcombine.high %v306, %v306
        %357 = vrot.lane.b32.xlu0 %v299, 109
        %v358 = vpop.permute.xlu0 %357
        %359 = vrot.lane.b32.xlu0 %v307, 109
        %v360 = vpop.permute.xlu0 %359
        %361 = vrot.lane.b32.xlu0 %v306, 109
        %v362 = vpop.permute.xlu0 %361
        %363 = vrot.lane.b32.xlu0 %v356, 109
        %v364 = vpop.permute.xlu0 %363
        %vm365 = vcmask 891904
        %v366 = vsel %vm365, %v358, %v360
        %v367 = vsel %vm365, %v360, %v362
        %v368 = vsel %vm365, %v362, %v364
        %369 = vrot.lane.b32.xlu0 %v315, 108
        %v370 = vpop.permute.xlu0 %369
        %371 = vrot.lane.b32.xlu0 %v316, 108
        %v372 = vpop.permute.xlu0 %371
        %373 = vrot.lane.b32.xlu0 %v299, 108
        %v374 = vpop.permute.xlu0 %373
        %375 = vrot.lane.b32.xlu0 %v307, 108
        %v376 = vpop.permute.xlu0 %375
        %vm377 = vcmask 883712
        %v378 = vsel %vm377, %v370, %v372
        %v379 = vsel %vm377, %v372, %v374
        %v380 = vsel %vm377, %v374, %v376
        %381 = vrot.lane.b32.xlu0 %v329, 92
        %v382 = vpop.permute.xlu0 %381
        %383 = vrot.lane.b32.xlu0 %v299, 92
        %v384 = vpop.permute.xlu0 %383
        %385 = vrot.lane.b32.xlu0 %v330, 92
        %v386 = vpop.permute.xlu0 %385
        %387 = vrot.lane.b32.xlu0 %v306, 92
        %v388 = vpop.permute.xlu0 %387
        %vm389 = vcmask 752640
        %v390 = vsel %vm389, %v382, %v384
        %v391 = vsel %vm389, %v384, %v386
        %v392 = vsel %vm389, %v386, %v388
        %393 = vrot.lane.b32.xlu0 %v343, 91
        %v394 = vpop.permute.xlu0 %393
        %395 = vrot.lane.b32.xlu0 %v315, 91
        %v396 = vpop.permute.xlu0 %395
        %397 = vrot.lane.b32.xlu0 %v329, 91
        %v398 = vpop.permute.xlu0 %397
        %399 = vrot.lane.b32.xlu0 %v299, 91
        %v400 = vpop.permute.xlu0 %399
        %vm401 = vcmask 744448
        %v402 = vsel %vm401, %v394, %v396
        %v403 = vsel %vm401, %v396, %v398
        %v404 = vsel %vm401, %v398, %v400
        %405 = vrot.lane.b32.xlu0 %v299, 90
        %v406 = vpop.permute.xlu0 %405
        %407 = vrot.lane.b32.xlu0 %v307, 90
        %v408 = vpop.permute.xlu0 %407
        %409 = vrot.lane.b32.xlu0 %v306, 90
        %v410 = vpop.permute.xlu0 %409
        %411 = vrot.lane.b32.xlu0 %v356, 90
        %v412 = vpop.permute.xlu0 %411
        %vm413 = vcmask 736256
        %v414 = vsel %vm413, %v406, %v408
        %v415 = vsel %vm413, %v408, %v410
        %v416 = vsel %vm413, %v410, %v412
        %vm417 = vcmask 1041408
        %v420 = vsel %vm417, %v299, %v326
        %v423 = vsel %vm417, %v307, %v327
        %v426 = vsel %vm417, %v306, %v328
        %vm427 = vcmask 1043456
        %v429 = vsel %vm427, %v420, %v340
        %v431 = vsel %vm427, %v423, %v341
        %v433 = vsel %vm427, %v426, %v342
        %vm434 = vcmask 1045504
        %v436 = vsel %vm434, %v429, %v353
        %v439 = vsel %vm434, %v431, %v354
        %v442 = vsel %vm434, %v433, %v355
        %v446 = vsel %vm417, %v366, %v378
        %v449 = vsel %vm417, %v367, %v379
        %v452 = vsel %vm417, %v368, %v380
        %v454 = vsel %vm427, %v446, %v390
        %v456 = vsel %vm427, %v449, %v391
        %v458 = vsel %vm427, %v452, %v392
        %v460 = vsel %vm434, %v454, %v402
        %v463 = vsel %vm434, %v456, %v403
        %v466 = vsel %vm434, %v458, %v404
        %v468 = vld [vmem:[%s2] sm:$0x3]
        %vm469 = vcmask 293888
        %v471 = vsel %vm469, %v468, 0
        %v474 = vsel %vm417, %v414, 0
        %v477 = vsel %vm417, %v415, 0
        %v480 = vsel %vm417, %v416, 0
        %482 = vmatprep.subr.bf16.mxu0 %v439
        %483 = vmatpush1.bf16.msra.mxu0 %v436
        %484 = vmatprep.subr.bf16.mxu0 %v463
        %485 = vmatpush1.bf16.msra.mxu0 %v460
        %486 = vmatprep.subr.bf16.mxu0 %v477
        %487 = vmatpush1.bf16.msra.mxu0 %v474
        %488 = vmatprep.subr.bf16.mxu0 0
        %489 = vmatpush1.bf16.msra.mxu0 0
        %490 = vmatprep.subr.bf16.mxu0 0
        %491 = vmatpush1.bf16.msra.mxu0 0
        %492 = vmatprep.subr.bf16.mxu0 0
        %493 = vmatpush1.bf16.msra.mxu0 0
        %494 = vmatprep.subr.bf16.mxu0 0
        %495 = vmatpush1.bf16.msra.mxu0 0
        %496 = vmatprep.subr.bf16.mxu0 0
        %497 = vmatpush1.bf16.msra.mxu0 0
        %498 = vmatprep.subr.bf16.mxu0 0
        %499 = vmatpush1.bf16.msra.mxu0 0
        %500 = vmatprep.subr.bf16.mxu0 0
        %501 = vmatpush1.bf16.msra.mxu0 0
        %502 = vmatprep.subr.bf16.mxu0 0
        %503 = vmatpush1.bf16.msra.mxu0 0
        %504 = vmatprep.subr.bf16.mxu0 0
        %505 = vmatpush1.bf16.msra.mxu0 0
        %506 = vmatprep.subr.bf16.mxu0 0
        %507 = vmatpush1.bf16.msra.mxu0 0
        %508 = vmatprep.subr.bf16.mxu0 0
        %509 = vmatpush1.bf16.msra.mxu0 0
        %510 = vmatprep.subr.bf16.mxu0 0
        %511 = vmatpush1.bf16.msra.mxu0 0
        %512 = vmatprep.subr.bf16.mxu0 0
        %513 = vmatpush1.bf16.msra.mxu0 0
        %514 = vmatprep.mubr.bf16.mxu0 0
        %515 = vmatmul.mubr.bf16.gmra.mrb[0].mxu0 %v471
        %v516 = vpop.f32.mrb[0].mxu0
        %v517 = vadd.f32 0.0, %v516
        %v518 = vpop.f32.mrb[0].mxu0
        %v519 = vadd.f32 0.0, %v518
        %v520 = vpop.f32.mrb[0].mxu0
        %v521 = vpop.f32.mrb[0].mxu0
        %522 = vdwg.mxu0
        %523 = vmatprep.subr.bf16.mxu0 0
        %524 = vmatpush1.bf16.msra.mxu0 %v442
        %525 = vmatprep.subr.bf16.mxu0 0
        %526 = vmatpush1.bf16.msra.mxu0 %v466
        %527 = vmatprep.subr.bf16.mxu0 0
        %528 = vmatpush1.bf16.msra.mxu0 %v480
        %529 = vmatprep.subr.bf16.mxu0 0
        %530 = vmatpush1.bf16.msra.mxu0 0
        %531 = vmatprep.subr.bf16.mxu0 0
        %532 = vmatpush1.bf16.msra.mxu0 0
        %533 = vmatprep.subr.bf16.mxu0 0
        %534 = vmatpush1.bf16.msra.mxu0 0
        %535 = vmatprep.subr.bf16.mxu0 0
        %536 = vmatpush1.bf16.msra.mxu0 0
        %537 = vmatprep.subr.bf16.mxu0 0
        %538 = vmatpush1.bf16.msra.mxu0 0
        %539 = vmatprep.subr.bf16.mxu0 0
        %540 = vmatpush1.bf16.msra.mxu0 0
        %541 = vmatprep.subr.bf16.mxu0 0
        %542 = vmatpush1.bf16.msra.mxu0 0
        %543 = vmatprep.subr.bf16.mxu0 0
        %544 = vmatpush1.bf16.msra.mxu0 0
        %545 = vmatprep.subr.bf16.mxu0 0
        %546 = vmatpush1.bf16.msra.mxu0 0
        %547 = vmatprep.subr.bf16.mxu0 0
        %548 = vmatpush1.bf16.msra.mxu0 0
        %549 = vmatprep.subr.bf16.mxu0 0
        %550 = vmatpush1.bf16.msra.mxu0 0
        %551 = vmatprep.subr.bf16.mxu0 0
        %552 = vmatpush1.bf16.msra.mxu0 0
        %553 = vmatprep.subr.bf16.mxu0 0
        %554 = vmatpush1.bf16.msra.mxu0 0
        %555 = vmatprep.mubr.bf16.mxu0 0
        %556 = vmatmul.mubr.bf16.gmra.mrb[0].mxu0 %v471
        %v557 = vpop.f32.mrb[0].mxu0
        %v558 = vadd.f32 0.0, %v557
        %v559 = vpop.f32.mrb[0].mxu0
        %v560 = vpop.f32.mrb[0].mxu0
        %v561 = vpop.f32.mrb[0].mxu0
        %562 = vdwg.mxu0
        %v563 = vld [vmem:[%s252] sm:$0xf]
        %565 = vrot.lane.b32.xlu0 %v563, 127
        %v566 = vpop.permute.xlu0 %565
        %v567 = vrot.slane %v566, 1
        %vm568 = vcmask 1039360
        %v569 = vsel %vm568, %v566, %v567
        %v571 = vadd.f32 %v563, %v569
        %572 = vrot.lane.b32.xlu0 %v563, 126
        %v573 = vpop.permute.xlu0 %572
        %v574 = vrot.slane %v573, 1
        %vm575 = vcmask 1031168
        %v576 = vsel %vm575, %v573, %v574
        %v578 = vadd.f32 %v571, %v576
        %579 = vrot.lane.b32.xlu0 %v563, 110
        %v580 = vpop.permute.xlu0 %579
        %v581 = vrot.slane %v580, 1
        %vm582 = vcmask 900096
        %v583 = vsel %vm582, %v580, %v581
        %v585 = vadd.f32 %v578, %v583
        %586 = vrot.lane.b32.xlu0 %v563, 109
        %v587 = vpop.permute.xlu0 %586
        %v588 = vrot.slane %v587, 1
        %vm589 = vcmask 891904
        %v590 = vsel %vm589, %v587, %v588
        %v592 = vadd.f32 %v585, %v590
        %593 = vrot.lane.b32.xlu0 %v563, 108
        %v594 = vpop.permute.xlu0 %593
        %v595 = vrot.slane %v594, 1
        %vm596 = vcmask 883712
        %v597 = vsel %vm596, %v594, %v595
        %v599 = vadd.f32 %v592, %v597
        %600 = vrot.lane.b32.xlu0 %v563, 92
        %v601 = vpop.permute.xlu0 %600
        %v602 = vrot.slane %v601, 1
        %vm603 = vcmask 752640
        %v604 = vsel %vm603, %v601, %v602
        %v606 = vadd.f32 %v599, %v604
        %607 = vrot.lane.b32.xlu0 %v563, 91
        %v608 = vpop.permute.xlu0 %607
        %v609 = vrot.slane %v608, 1
        %vm610 = vcmask 744448
        %v611 = vsel %vm610, %v608, %v609
        %v613 = vadd.f32 %v606, %v611
        %614 = vrot.lane.b32.xlu0 %v563, 90
        %v615 = vpop.permute.xlu0 %614
        %v616 = vrot.slane %v615, 1
        %vm617 = vcmask 736256
        %v618 = vsel %vm617, %v615, %v616
        %v620 = vadd.f32 %v613, %v618
        %v621 = vmax.f32 %v620, 1e-08
        %v622 = vrcp.pop %v621
        %v623 = vmul.f32 %v622, 36.0
        %v624 = vmin.f32 %v623, 36.0
        %v626 = vlaneseq
        %v627 = vshrl.u32 %v626, 7
        %v628 = vsub.s32 0, %v627
        %v629 = vrot.slane %v624, %v628
        %v630 = vlaneseq
        %v631 = vshrl.u32 %v630, 7
        %v632 = vsub.s32 1, %v631
        %v633 = vrot.slane %v624, %v632
        %v634 = vlaneseq
        %v635 = vshrl.u32 %v634, 7
        %v636 = vsub.s32 2, %v635
        %v637 = vrot.slane %v624, %v636
        %v641 = vmul.f32 %v517, %v629
        %v642 = vmul.f32 %v519, %v633
        %v643 = vmul.f32 %v558, %v637
        %v644 = vmax.f32 %v641, -1.0
        %v645 = vmax.f32 %v642, -1.0
        %v646 = vmax.f32 %v643, -1.0
        %v647 = vmin.f32 %v644, 1.0
        %v648 = vmin.f32 %v645, 1.0
        %v649 = vmin.f32 %v646, 1.0
        %v652 = vcombine.low %v647, %v648
        %654 = vst [vmem:[%s279] sm:$0xff] %v652
        %655 = vst [vmem:[%s279 + $0x8] sm:$0xf] %v649
        %vm656 = vcmp.gt.f32.partialorder %v621, 1e-08
        %v657 = vmul.f32 %v621, 0.027777778
        %v658 = vmin.f32 %v657, 1.0
        %v659 = vsel %vm656, %v658, 0.0
        %v660 = vlaneseq
        %vm661 = vcmp.ge.s32.totalorder %v660, 0
        %vm662 = vcmp.lt.s32.totalorder %v660, 384
        %vm663 = vmand %vm661, %vm662
        %664 = vst.msk [vmem:[%s286] sm:$0x7] %vm663, %v659
        %s665 = sand.u32 %s127, 1
        %s666 = scalar_lea.sflag [#allocation4], %s665
        %s667 = sand.u32 %s127, 1
        %s668 = smul.addr %s667, 12
        %s669 = scalar_lea.vmem [#allocation7], %s668
        %s670 = sand.u32 %s155, 1
        %s671 = scalar_lea.sflag [#allocation9], %s670
        %s672 = sand.u32 %s155, 1
        %s673 = smul.addr %s672, 3
        %s674 = scalar_lea.vmem [#allocation8], %s673
        // Predicated region
        $region41: #{tpu_custom_call.1} parent=31 // pred_check
          %p675 = pneg %p137
        $region42: #{tpu_custom_call.1} parent=31 // pred_check_branch
          %677 = sbr.rel (%p675) target = $region44
        $region43: #{tpu_custom_call.1} parent=31 // pred_region
          %s678 = smul.u32 3, %s33
          %s680 = ssub.s32 192, 192
          %681 = vsyncadd %s666, %s680
          %s682 = smul.addr %s32, 3
          %s683 = sadd.s32 %s678, %s682
          %s684 = smul.addr %s683, 64
          %s685 = scalar_lea.hbm %s3, %s684
          %s687 = sshll.u32 %s669, 4
          %s688 = int_to_ptr.vmem [resolvable:$true] %s687
          %690 = dma.vmem_to_hbm [thread:$0]  %s688, 192, %s685, %s666
        $region44: #{tpu_custom_call.1} parent=31 // pred_fallthru
          _
        // Predicated region
        $region45: #{tpu_custom_call.1} parent=31 // pred_check
          %p691 = pneg %p165
        $region46: #{tpu_custom_call.1} parent=31 // pred_check_branch
          %693 = sbr.rel (%p691) target = $region48
        $region47: #{tpu_custom_call.1} parent=31 // pred_region
          %s694 = smul.u32 3, %s33
          %s696 = ssub.s32 48, 48
          %697 = vsyncadd %s671, %s696
          %s698 = smul.addr %s32, 3
          %s699 = sadd.s32 %s694, %s698
          %s700 = smul.addr %s699, 16
          %s701 = scalar_lea.hbm %s4, %s700
          %s703 = sshll.u32 %s674, 4
          %s704 = int_to_ptr.vmem [resolvable:$true] %s703
          %706 = dma.vmem_to_hbm [thread:$0]  %s704, 48, %s701, %s671
        $region48: #{tpu_custom_call.1} parent=31 // pred_fallthru
          _
      $region32: #{tpu_custom_call.1} parent=5 // pred_fallthru
        _
      %p707 = scmp.le.s32.totalorder 2, %s23
      // Predicated region
      $region49: #{tpu_custom_call.1} parent=5 // pred_check
        %p708 = pneg %p707
      $region50: #{tpu_custom_call.1} parent=5 // pred_check_branch
        %710 = sbr.rel (%p708) target = $region52
      $region51: #{tpu_custom_call.1} parent=5 // pred_region
        %s711 = ssub.s32 %s23, 2
        // Predicated region
        $region53: #{tpu_custom_call.1} parent=51 // pred_check
          %p712 = pneg %p143
        $region54: #{tpu_custom_call.1} parent=51 // pred_check_branch
          %714 = sbr.rel (%p712) target = $region56
        $region55: #{tpu_custom_call.1} parent=51 // pred_region
          %s715 = sand.u32 %s128, 1
          %s716 = scalar_lea.sflag [#allocation4], %s715
          %s717 = sand.u32 %s128, 1
          %s718 = smul.addr %s717, 12
          %s719 = scalar_lea.vmem [#allocation7], %s718
          %720 = dma.done %s716, 192
        $region56: #{tpu_custom_call.1} parent=51 // pred_fallthru
          _
        // Predicated region
        $region57: #{tpu_custom_call.1} parent=51 // pred_check
          %p721 = pneg %p171
        $region58: #{tpu_custom_call.1} parent=51 // pred_check_branch
          %723 = sbr.rel (%p721) target = $region60
        $region59: #{tpu_custom_call.1} parent=51 // pred_region
          %s724 = sand.u32 %s156, 1
          %s725 = scalar_lea.sflag [#allocation9], %s724
          %s726 = sand.u32 %s156, 1
          %s727 = smul.addr %s726, 3
          %s728 = scalar_lea.vmem [#allocation8], %s727
          %729 = dma.done %s725, 48
        $region60: #{tpu_custom_call.1} parent=51 // pred_fallthru
          _
      $region52: #{tpu_custom_call.1} parent=5 // pred_fallthru
        _
    $region6: #{tpu_custom_call.1} parent=1 // loop_footer
      %s27 = sadd.s32 1, %s23
    $region7: #{tpu_custom_call.1} parent=1 // loop_footer_branch
      %22 = sbr.rel target = $region3
    $region8: #{tpu_custom_call.1} parent=1 // loop_exit
      _
    %730 = vsyncpa [#allocation3], 1
    %s731 = scalar_lea.sflag [#allocation3], 1
    %732 = vsyncpa %s731, 1
    %733 = vsyncpa [#allocation6], 1
    %s734 = scalar_lea.sflag [#allocation6], 1
    %735 = vsyncpa %s734, 1
    %736 = vsyncpa [#allocation4], 1
    %s737 = scalar_lea.sflag [#allocation4], 1
    %738 = vsyncpa %s737, 1
    %739 = vsyncpa [#allocation9], 1
    %s740 = scalar_lea.sflag [#allocation9], 1
    %741 = vsyncpa %s740, 1

</llo_original>
